<compile_context>
chip_gen: v6e
topology: v6e:2x2x1
jax: 0.10.0
libtpu: 0.0.40
codegen_flags: <defaults>
</compile_context>

<pallas_src>
import jax
import jax.numpy as jnp
from jax.experimental import pallas as pl
from jax.experimental.pallas import tpu as pltpu  # noqa: F401  (TPU backend)

HIDDEN_SIZE = 5
INPUT_SIZE = 5
NUM_CLASSES = 5
NUM_LAYERS = 1
SEQUENCE_LENGTH = 6

_SUBLANE = 8
_LANE = 128


def _round_up(n, m):
    return ((n + m - 1) // m) * m


def rnn_kernel(x_ref, w_ih_t_ref, w_hh_t_ref, b_ref, out_ref):
    """Single-layer tanh RNN over the full sequence (time-major, padded).

    x_ref      : (T, Bp, Dp) float32   time-major, zero-padded batch/lanes
    w_ih_t_ref : (Dp, Hp)    float32   W_ih^T, zero-padded
    w_hh_t_ref : (Hp, Hp)    float32   W_hh^T, zero-padded
    b_ref      : (1, Hp)     float32   b_ih + b_hh, zero-padded
    out_ref    : (T, Bp, Hp) float32
    """
    T, Bp, _ = x_ref.shape
    Hp = out_ref.shape[-1]

    x = x_ref[...]
    w_ih_t = w_ih_t_ref[...]
    w_hh_t = w_hh_t_ref[...]
    b = b_ref[...]  # (1, Hp)

    # Hoisted input projection: one MXU matmul for all timesteps, plus a single
    # materialized bias broadcast. Entirely off the serial h-dependency chain.
    xp = (
        jax.lax.dot_general(
            x,
            w_ih_t,
            dimension_numbers=(((2,), (0,)), ((), ())),
            preferred_element_type=jnp.float32,
        )
        + b
    )  # (T, Bp, Hp)

    # Serial recurrence: per step just one matmul + add + tanh.
    h = jnp.zeros((Bp, Hp), dtype=jnp.float32)
    hs = []
    for t in range(T):  # T is small and static -> unroll
        h = jnp.tanh(
            xp[t] + jnp.dot(h, w_hh_t, preferred_element_type=jnp.float32)
        )
        hs.append(h)

    # Single whole-block store (no per-timestep masked stores).
    out_ref[...] = jnp.stack(hs, axis=0)


def rnn_forward(x, w_ih, w_hh, b_ih, b_hh):
    """x: (B, T, D). Returns (B*T, NUM_CLASSES), matching the PyTorch forward."""
    B, T, D = x.shape
    H = w_ih.shape[0]
    # The PyTorch module's final view(-1, num_classes) assumes H == num_classes.
    assert H == NUM_CLASSES, "out.view(-1, num_classes) requires hidden == classes"

    Bp = _round_up(B, _SUBLANE)
    Dp = _round_up(D, _LANE)
    Hp = _round_up(H, _LANE)

    # Zero-pad and transpose to time-major (T, Bp, Dp). Padded lanes/rows stay
    # numerically inert because the padded weight/bias entries are zero.
    x_p = jnp.zeros((Bp, T, Dp), jnp.float32).at[:B, :, :D].set(x.astype(jnp.float32))
    x_tbd = jnp.transpose(x_p, (1, 0, 2))  # (T, Bp, Dp)

    w_ih_t = jnp.zeros((Dp, Hp), jnp.float32).at[:D, :H].set(
        jnp.transpose(w_ih).astype(jnp.float32)
    )
    w_hh_t = jnp.zeros((Hp, Hp), jnp.float32).at[:H, :H].set(
        jnp.transpose(w_hh).astype(jnp.float32)
    )
    b = jnp.zeros((1, Hp), jnp.float32).at[0, :H].set(
        (b_ih + b_hh).astype(jnp.float32)
    )

    out = pl.pallas_call(
        rnn_kernel,
        out_shape=jax.ShapeDtypeStruct((T, Bp, Hp), jnp.float32),
        in_specs=[
            pl.BlockSpec((T, Bp, Dp), lambda: (0, 0, 0)),
            pl.BlockSpec((Dp, Hp), lambda: (0, 0)),
            pl.BlockSpec((Hp, Hp), lambda: (0, 0)),
            pl.BlockSpec((1, Hp), lambda: (0, 0)),
        ],
        out_specs=pl.BlockSpec((T, Bp, Hp), lambda: (0, 0, 0)),
    )(x_tbd, w_ih_t, w_hh_t, b)

    # Unpad: (T, Bp, Hp) -> (B, T, H) -> (B*T, NUM_CLASSES)
    out = jnp.transpose(out[:, :B, :H], (1, 0, 2))
    return out.reshape(-1, NUM_CLASSES)


def _reference_rnn(x, w_ih, w_hh, b_ih, b_hh):
    """Pure-JAX reference of the same recurrence for sanity checking."""
    B, T, D = x.shape
    H = w_ih.shape[0]
    h = jnp.zeros((B, H), dtype=jnp.float32)
    outs = []
    for t in range(T):
        h = jnp.tanh(x[:, t, :] @ w_ih.T + b_ih + h @ w_hh.T + b_hh)
        outs.append(h)
    return jnp.stack(outs, axis=1).reshape(-1, NUM_CLASSES)


if __name__ == "__main__":
    key = jax.random.PRNGKey(0)
    k_x, k_wih, k_whh, k_bih, k_bhh = jax.random.split(key, 5)

    batch = 2
    # Deterministic parameter init, PyTorch-style uniform(-1/sqrt(H), 1/sqrt(H)).
    bound = 1.0 / (HIDDEN_SIZE ** 0.5)
    w_ih = jax.random.uniform(k_wih, (HIDDEN_SIZE, INPUT_SIZE), jnp.float32, -bound, bound)
    w_hh = jax.random.uniform(k_whh, (HIDDEN_SIZE, HIDDEN_SIZE), jnp.float32, -bound, bound)
    b_ih = jax.random.uniform(k_bih, (HIDDEN_SIZE,), jnp.float32, -bound, bound)
    b_hh = jax.random.uniform(k_bhh, (HIDDEN_SIZE,), jnp.float32, -bound, bound)

    x = jax.random.normal(k_x, (batch, SEQUENCE_LENGTH, INPUT_SIZE), jnp.float32)

    out = rnn_forward(x, w_ih, w_hh, b_ih, b_hh)
    out = jax.block_until_ready(out)

    ref = _reference_rnn(x, w_ih, w_hh, b_ih, b_hh)
    assert out.shape == (batch * SEQUENCE_LENGTH, NUM_CLASSES), out.shape
    assert jnp.allclose(out, ref, atol=1e-5, rtol=1e-5), "mismatch vs reference"

    print("KERNEL_OK")
</pallas_src>

<mosaic_0001>
module attributes {stable_mosaic.version = 11 : i64} {
  func.func @rnn_kernel(%arg0: memref<6x8x128xf32, #tpu.memory_space<vmem>>, %arg1: memref<128x128xf32, #tpu.memory_space<vmem>>, %arg2: memref<128x128xf32, #tpu.memory_space<vmem>>, %arg3: memref<1x128xf32, #tpu.memory_space<vmem>>, %arg4: memref<6x8x128xf32, #tpu.memory_space<vmem>>) attributes {dimension_semantics = [], scalar_prefetch = 0 : i64, scratch_operands = 0 : i64, tpu.core_type = #tpu.core_type<tc>} {
    %c0 = arith.constant 0 : index
    %c0_0 = arith.constant 0 : index
    %c0_1 = arith.constant 0 : index
    %0 = vector.load %arg0[%c0, %c0_0, %c0_1] : memref<6x8x128xf32, #tpu.memory_space<vmem>>, vector<6x8x128xf32>
    %c0_2 = arith.constant 0 : index
    %c0_3 = arith.constant 0 : index
    %1 = vector.load %arg1[%c0_2, %c0_3] : memref<128x128xf32, #tpu.memory_space<vmem>>, vector<128x128xf32>
    %c0_4 = arith.constant 0 : index
    %c0_5 = arith.constant 0 : index
    %2 = vector.load %arg2[%c0_4, %c0_5] : memref<128x128xf32, #tpu.memory_space<vmem>>, vector<128x128xf32>
    %c0_6 = arith.constant 0 : index
    %c0_7 = arith.constant 0 : index
    %3 = vector.load %arg3[%c0_6, %c0_7] : memref<1x128xf32, #tpu.memory_space<vmem>>, vector<1x128xf32>
    %cst = arith.constant dense<0.000000e+00> : vector<6x8x128xf32>
    %4 = tpu.matmul %0, %1, %cst {dimension_numbers = #tpu.dot_dimension_numbers<[2], [0], [0, 1], [1], [0, 0, 0, 1, 1, 1], [], []>} : vector<6x8x128xf32>, vector<128x128xf32>, vector<6x8x128xf32> -> vector<6x8x128xf32>
    %5 = vector.shape_cast %3 : vector<1x128xf32> to vector<1x1x128xf32>
    %6 = vector.broadcast %5 : vector<1x1x128xf32> to vector<6x8x128xf32>
    %7 = arith.addf %4, %6 : vector<6x8x128xf32>
    %cst_8 = arith.constant 0.000000e+00 : f32
    %8 = vector.broadcast %cst_8 : f32 to vector<8x128xf32>
    %9 = vector.extract_strided_slice %7 {offsets = [0, 0, 0], sizes = [1, 8, 128], strides = [1, 1, 1]} : vector<6x8x128xf32> to vector<1x8x128xf32>
    %10 = vector.shape_cast %9 : vector<1x8x128xf32> to vector<8x128xf32>
    %cst_9 = arith.constant dense<0.000000e+00> : vector<8x128xf32>
    %11 = tpu.matmul %8, %2, %cst_9 {dimension_numbers = #tpu.dot_dimension_numbers<[1], [0], [0], [1], [0, 0, 1, 1], [], []>} : vector<8x128xf32>, vector<128x128xf32>, vector<8x128xf32> -> vector<8x128xf32>
    %12 = arith.addf %10, %11 : vector<8x128xf32>
    %13 = math.tanh %12 : vector<8x128xf32>
    %14 = vector.extract_strided_slice %7 {offsets = [1, 0, 0], sizes = [1, 8, 128], strides = [1, 1, 1]} : vector<6x8x128xf32> to vector<1x8x128xf32>
    %15 = vector.shape_cast %14 : vector<1x8x128xf32> to vector<8x128xf32>
    %cst_10 = arith.constant dense<0.000000e+00> : vector<8x128xf32>
    %16 = tpu.matmul %13, %2, %cst_10 {dimension_numbers = #tpu.dot_dimension_numbers<[1], [0], [0], [1], [0, 0, 1, 1], [], []>} : vector<8x128xf32>, vector<128x128xf32>, vector<8x128xf32> -> vector<8x128xf32>
    %17 = arith.addf %15, %16 : vector<8x128xf32>
    %18 = math.tanh %17 : vector<8x128xf32>
    %19 = vector.extract_strided_slice %7 {offsets = [2, 0, 0], sizes = [1, 8, 128], strides = [1, 1, 1]} : vector<6x8x128xf32> to vector<1x8x128xf32>
    %20 = vector.shape_cast %19 : vector<1x8x128xf32> to vector<8x128xf32>
    %cst_11 = arith.constant dense<0.000000e+00> : vector<8x128xf32>
    %21 = tpu.matmul %18, %2, %cst_11 {dimension_numbers = #tpu.dot_dimension_numbers<[1], [0], [0], [1], [0, 0, 1, 1], [], []>} : vector<8x128xf32>, vector<128x128xf32>, vector<8x128xf32> -> vector<8x128xf32>
    %22 = arith.addf %20, %21 : vector<8x128xf32>
    %23 = math.tanh %22 : vector<8x128xf32>
    %24 = vector.extract_strided_slice %7 {offsets = [3, 0, 0], sizes = [1, 8, 128], strides = [1, 1, 1]} : vector<6x8x128xf32> to vector<1x8x128xf32>
    %25 = vector.shape_cast %24 : vector<1x8x128xf32> to vector<8x128xf32>
    %cst_12 = arith.constant dense<0.000000e+00> : vector<8x128xf32>
    %26 = tpu.matmul %23, %2, %cst_12 {dimension_numbers = #tpu.dot_dimension_numbers<[1], [0], [0], [1], [0, 0, 1, 1], [], []>} : vector<8x128xf32>, vector<128x128xf32>, vector<8x128xf32> -> vector<8x128xf32>
    %27 = arith.addf %25, %26 : vector<8x128xf32>
    %28 = math.tanh %27 : vector<8x128xf32>
    %29 = vector.extract_strided_slice %7 {offsets = [4, 0, 0], sizes = [1, 8, 128], strides = [1, 1, 1]} : vector<6x8x128xf32> to vector<1x8x128xf32>
    %30 = vector.shape_cast %29 : vector<1x8x128xf32> to vector<8x128xf32>
    %cst_13 = arith.constant dense<0.000000e+00> : vector<8x128xf32>
    %31 = tpu.matmul %28, %2, %cst_13 {dimension_numbers = #tpu.dot_dimension_numbers<[1], [0], [0], [1], [0, 0, 1, 1], [], []>} : vector<8x128xf32>, vector<128x128xf32>, vector<8x128xf32> -> vector<8x128xf32>
    %32 = arith.addf %30, %31 : vector<8x128xf32>
    %33 = math.tanh %32 : vector<8x128xf32>
    %34 = vector.extract_strided_slice %7 {offsets = [5, 0, 0], sizes = [1, 8, 128], strides = [1, 1, 1]} : vector<6x8x128xf32> to vector<1x8x128xf32>
    %35 = vector.shape_cast %34 : vector<1x8x128xf32> to vector<8x128xf32>
    %cst_14 = arith.constant dense<0.000000e+00> : vector<8x128xf32>
    %36 = tpu.matmul %33, %2, %cst_14 {dimension_numbers = #tpu.dot_dimension_numbers<[1], [0], [0], [1], [0, 0, 1, 1], [], []>} : vector<8x128xf32>, vector<128x128xf32>, vector<8x128xf32> -> vector<8x128xf32>
    %37 = arith.addf %35, %36 : vector<8x128xf32>
    %38 = math.tanh %37 : vector<8x128xf32>
    %39 = vector.shape_cast %13 : vector<8x128xf32> to vector<1x8x128xf32>
    %40 = vector.shape_cast %18 : vector<8x128xf32> to vector<1x8x128xf32>
    %41 = vector.shape_cast %23 : vector<8x128xf32> to vector<1x8x128xf32>
    %42 = vector.shape_cast %28 : vector<8x128xf32> to vector<1x8x128xf32>
    %43 = vector.shape_cast %33 : vector<8x128xf32> to vector<1x8x128xf32>
    %44 = vector.shape_cast %38 : vector<8x128xf32> to vector<1x8x128xf32>
    %45 = tpu.concatenate %39, %40, %41, %42, %43, %44 in 0 : vector<1x8x128xf32>, vector<1x8x128xf32>, vector<1x8x128xf32>, vector<1x8x128xf32>, vector<1x8x128xf32>, vector<1x8x128xf32> -> vector<6x8x128xf32>
    %c0_15 = arith.constant 0 : index
    %c0_16 = arith.constant 0 : index
    %c0_17 = arith.constant 0 : index
    %46 = vector.load %arg4[%c0_15, %c0_16, %c0_17] : memref<6x8x128xf32, #tpu.memory_space<vmem>>, vector<6x8x128xf32>
    tpu.vector_store %arg4[%c0_15, %c0_16, %c0_17], %45 {strides = array<i32>} : memref<6x8x128xf32, #tpu.memory_space<vmem>>, vector<6x8x128xf32>,
    return
  }
}

</mosaic_0001>

<llo_original>
// kernel: tpu_custom_call.1
$region0: #{tpu_custom_call.1}
  #allocation0 [shape = 'u32[]', space=smem, size = 0x4, offset = 0x4, fixed_abs, tag = 'smem constant byte address 0x4 - core index']
  #allocation1 [shape = 'u32[144,128]{1,0:T(1,128)}', space=vmem, size = 0x12000, scoped, tag = 'internal scratch']
  %s0 = inlined_call_operand.hbm [shape: f32[6,8,128], index: 0, kind: input, shape index: {}]
  %s1 = inlined_call_operand.hbm [shape: f32[128,128], index: 1, kind: input, shape index: {}]
  %s2 = inlined_call_operand.hbm [shape: f32[128,128], index: 2, kind: input, shape index: {}]
  %s3 = inlined_call_operand.vmem [shape: f32[1,128], index: 3, kind: input, shape index: {}]
  %s4 = inlined_call_operand.hbm [shape: f32[6,8,128], index: 4, kind: output, shape index: {}]
  %s5 = sld [smem:[#allocation0]]
  $region38: #{tpu_custom_call.1} parent=0
    _
  %s7 = ssub.s32 1, %s5
  %s8 = scalar_select 0, %s7, %s5
  $region1: #{tpu_custom_call.1} parent=0
    #allocation2 [shape = 'u8[24576]{0}', space=vmem, size = 0x6000, scoped, tag = 'input window, operand 0, single buffered']
    #allocation3 [shape = 's32[1]{0}', space=sflag, size = 0x4, scoped, tag = 'scoped memory for tpu_custom_call.1']
    #allocation4 [shape = 's32[1]{0}', space=sflag, size = 0x4, scoped, tag = 'scoped memory for tpu_custom_call.1']
    #allocation5 [shape = 'u8[65536]{0}', space=vmem, size = 0x10000, scoped, tag = 'input window, operand 1, single buffered']
    #allocation6 [shape = 's32[1]{0}', space=sflag, size = 0x4, scoped, tag = 'scoped memory for tpu_custom_call.1']
    #allocation7 [shape = 'u8[65536]{0}', space=vmem, size = 0x10000, scoped, tag = 'input window, operand 2, single buffered']
    #allocation8 [shape = 'u8[24576]{0}', space=vmem, size = 0x6000, scoped, tag = 'output window, operand 0, single buffered']
    %9 = vsyncpa [#allocation3], 0
    %10 = vsyncpa [#allocation6], 0
    %11 = vsyncpa [#allocation4], 0
    // Predicated region
    $region2: #{tpu_custom_call.1} parent=1 // pred_check
      _
    $region3: #{tpu_custom_call.1} parent=1 // pred_check_branch
      %13 = sbr.rel (0) target = $region5
    $region4: #{tpu_custom_call.1} parent=1 // pred_region
      %s15 = ssub.s32 768, 768
      %16 = vsyncadd [#allocation3], %s15
      %s17 = sshll.u32 [#allocation2], 4
      %s18 = int_to_ptr.vmem [resolvable:$true] %s17
      %23 = dma.hbm_to_vmem [thread:$0]  %s0, 768, %s18, [#allocation3], 128, 128, 8
    $region5: #{tpu_custom_call.1} parent=1 // pred_fallthru
      _
    // Predicated region
    $region6: #{tpu_custom_call.1} parent=1 // pred_check
      _
    $region7: #{tpu_custom_call.1} parent=1 // pred_check_branch
      %25 = sbr.rel (0) target = $region9
    $region8: #{tpu_custom_call.1} parent=1 // pred_region
      %s27 = ssub.s32 2048, 2048
      %28 = vsyncadd [#allocation6], %s27
      %s29 = sshll.u32 [#allocation5], 4
      %s30 = int_to_ptr.vmem [resolvable:$true] %s29
      %35 = dma.hbm_to_vmem [thread:$0]  %s1, 2048, %s30, [#allocation6], 128, 128, 8
    $region9: #{tpu_custom_call.1} parent=1 // pred_fallthru
      _
    // Predicated region
    $region10: #{tpu_custom_call.1} parent=1 // pred_check
      _
    $region11: #{tpu_custom_call.1} parent=1 // pred_check_branch
      %37 = sbr.rel (0) target = $region13
    $region12: #{tpu_custom_call.1} parent=1 // pred_region
      %s39 = ssub.s32 2048, 2048
      %40 = vsyncadd [#allocation6], %s39
      %s41 = sshll.u32 [#allocation7], 4
      %s42 = int_to_ptr.vmem [resolvable:$true] %s41
      %47 = dma.hbm_to_vmem [thread:$0]  %s2, 2048, %s42, [#allocation6], 128, 128, 8
    $region13: #{tpu_custom_call.1} parent=1 // pred_fallthru
      _
    // Predicated region
    $region14: #{tpu_custom_call.1} parent=1 // pred_check
      _
    $region15: #{tpu_custom_call.1} parent=1 // pred_check_branch
      %49 = sbr.rel (0) target = $region17
    $region16: #{tpu_custom_call.1} parent=1 // pred_region
      _
    $region17: #{tpu_custom_call.1} parent=1 // pred_fallthru
      _
    // Predicated region
    $region18: #{tpu_custom_call.1} parent=1 // pred_check
      _
    $region19: #{tpu_custom_call.1} parent=1 // pred_check_branch
      %51 = sbr.rel (0) target = $region21
    $region20: #{tpu_custom_call.1} parent=1 // pred_region
      %52 = dma.done [#allocation3], 768
    $region21: #{tpu_custom_call.1} parent=1 // pred_fallthru
      _
    // Predicated region
    $region22: #{tpu_custom_call.1} parent=1 // pred_check
      _
    $region23: #{tpu_custom_call.1} parent=1 // pred_check_branch
      %54 = sbr.rel (0) target = $region25
    $region24: #{tpu_custom_call.1} parent=1 // pred_region
      %55 = dma.done [#allocation6], 2048
    $region25: #{tpu_custom_call.1} parent=1 // pred_fallthru
      _
    // Predicated region
    $region26: #{tpu_custom_call.1} parent=1 // pred_check
      _
    $region27: #{tpu_custom_call.1} parent=1 // pred_check_branch
      %57 = sbr.rel (0) target = $region29
    $region28: #{tpu_custom_call.1} parent=1 // pred_region
      %58 = dma.done [#allocation6], 2048
    $region29: #{tpu_custom_call.1} parent=1 // pred_fallthru
      _
    %v59 = vld [vmem:[#allocation2] sm:$0xff]
    %v60 = vld [vmem:[#allocation2 + $0x8] sm:$0xff]
    %v61 = vld [vmem:[#allocation2 + $0x10] sm:$0xff]
    %v62 = vld [vmem:[#allocation2 + $0x18] sm:$0xff]
    %v63 = vld [vmem:[#allocation2 + $0x20] sm:$0xff]
    %v64 = vld [vmem:[#allocation2 + $0x28] sm:$0xff]
    %v65 = vld [vmem:[#allocation5] sm:$0xff]
    %v66 = vld [vmem:[#allocation5 + $0x8] sm:$0xff]
    %v67 = vld [vmem:[#allocation5 + $0x10] sm:$0xff]
    %v68 = vld [vmem:[#allocation5 + $0x18] sm:$0xff]
    %v69 = vld [vmem:[#allocation5 + $0x20] sm:$0xff]
    %v70 = vld [vmem:[#allocation5 + $0x28] sm:$0xff]
    %v71 = vld [vmem:[#allocation5 + $0x30] sm:$0xff]
    %v72 = vld [vmem:[#allocation5 + $0x38] sm:$0xff]
    %v73 = vld [vmem:[#allocation5 + $0x40] sm:$0xff]
    %v74 = vld [vmem:[#allocation5 + $0x48] sm:$0xff]
    %v75 = vld [vmem:[#allocation5 + $0x50] sm:$0xff]
    %v76 = vld [vmem:[#allocation5 + $0x58] sm:$0xff]
    %v77 = vld [vmem:[#allocation5 + $0x60] sm:$0xff]
    %v78 = vld [vmem:[#allocation5 + $0x68] sm:$0xff]
    %v79 = vld [vmem:[#allocation5 + $0x70] sm:$0xff]
    %v80 = vld [vmem:[#allocation5 + $0x78] sm:$0xff]
    %v81 = vld [vmem:[#allocation7] sm:$0xff]
    %v82 = vld [vmem:[#allocation7 + $0x8] sm:$0xff]
    %v83 = vld [vmem:[#allocation7 + $0x10] sm:$0xff]
    %v84 = vld [vmem:[#allocation7 + $0x18] sm:$0xff]
    %v85 = vld [vmem:[#allocation7 + $0x20] sm:$0xff]
    %v86 = vld [vmem:[#allocation7 + $0x28] sm:$0xff]
    %v87 = vld [vmem:[#allocation7 + $0x30] sm:$0xff]
    %v88 = vld [vmem:[#allocation7 + $0x38] sm:$0xff]
    %v89 = vld [vmem:[#allocation7 + $0x40] sm:$0xff]
    %v90 = vld [vmem:[#allocation7 + $0x48] sm:$0xff]
    %v91 = vld [vmem:[#allocation7 + $0x50] sm:$0xff]
    %v92 = vld [vmem:[#allocation7 + $0x58] sm:$0xff]
    %v93 = vld [vmem:[#allocation7 + $0x60] sm:$0xff]
    %v94 = vld [vmem:[#allocation7 + $0x68] sm:$0xff]
    %v95 = vld [vmem:[#allocation7 + $0x70] sm:$0xff]
    %v96 = vld [vmem:[#allocation7 + $0x78] sm:$0xff]
    %v97 = vld [vmem:[%s3] sm:$0x1]
    %v99 = vlaneseq
    %v100 = vshrl.u32 %v99, 7
    %v101 = vsub.s32 0, %v100
    %v102 = vrot.slane %v97, %v101
    %104 = vmatprep.subr.mxu0 0.0
    %105 = vmatpush1.msra.mxu0 %v80
    %106 = vmatprep.subr.mxu0 0.0
    %107 = vmatpush1.msra.mxu0 %v79
    %108 = vmatprep.subr.mxu0 0.0
    %109 = vmatpush1.msra.mxu0 %v78
    %110 = vmatprep.subr.mxu0 0.0
    %111 = vmatpush1.msra.mxu0 %v77
    %112 = vmatprep.subr.mxu0 0.0
    %113 = vmatpush1.msra.mxu0 %v76
    %114 = vmatprep.subr.mxu0 0.0
    %115 = vmatpush1.msra.mxu0 %v75
    %116 = vmatprep.subr.mxu0 0.0
    %117 = vmatpush1.msra.mxu0 %v74
    %118 = vmatprep.subr.mxu0 0.0
    %119 = vmatpush1.msra.mxu0 %v73
    %120 = vmatprep.subr.mxu0 0.0
    %121 = vmatpush1.msra.mxu0 %v72
    %122 = vmatprep.subr.mxu0 0.0
    %123 = vmatpush1.msra.mxu0 %v71
    %124 = vmatprep.subr.mxu0 0.0
    %125 = vmatpush1.msra.mxu0 %v70
    %126 = vmatprep.subr.mxu0 0.0
    %127 = vmatpush1.msra.mxu0 %v69
    %128 = vmatprep.subr.mxu0 0.0
    %129 = vmatpush1.msra.mxu0 %v68
    %130 = vmatprep.subr.mxu0 0.0
    %131 = vmatpush1.msra.mxu0 %v67
    %132 = vmatprep.subr.mxu0 0.0
    %133 = vmatpush1.msra.mxu0 %v66
    %134 = vmatprep.subr.mxu0 0.0
    %135 = vmatpush1.msra.mxu0 %v65
    %136 = vmatprep.subr.mxu0 0.0
    %137 = vmatpush2.msra.mxu0 0.0
    %138 = vmatprep.subr.mxu0 0.0
    %139 = vmatpush2.msra.mxu0 0.0
    %140 = vmatprep.subr.mxu0 0.0
    %141 = vmatpush2.msra.mxu0 0.0
    %142 = vmatprep.subr.mxu0 0.0
    %143 = vmatpush2.msra.mxu0 0.0
    %144 = vmatprep.subr.mxu0 0.0
    %145 = vmatpush2.msra.mxu0 0.0
    %146 = vmatprep.subr.mxu0 0.0
    %147 = vmatpush2.msra.mxu0 0.0
    %148 = vmatprep.subr.mxu0 0.0
    %149 = vmatpush2.msra.mxu0 0.0
    %150 = vmatprep.subr.mxu0 0.0
    %151 = vmatpush2.msra.mxu0 0.0
    %152 = vmatprep.subr.mxu0 0.0
    %153 = vmatpush2.msra.mxu0 0.0
    %154 = vmatprep.subr.mxu0 0.0
    %155 = vmatpush2.msra.mxu0 0.0
    %156 = vmatprep.subr.mxu0 0.0
    %157 = vmatpush2.msra.mxu0 0.0
    %158 = vmatprep.subr.mxu0 0.0
    %159 = vmatpush2.msra.mxu0 0.0
    %160 = vmatprep.subr.mxu0 0.0
    %161 = vmatpush2.msra.mxu0 0.0
    %162 = vmatprep.subr.mxu0 0.0
    %163 = vmatpush2.msra.mxu0 0.0
    %164 = vmatprep.subr.mxu0 0.0
    %165 = vmatpush2.msra.mxu0 0.0
    %166 = vmatprep.subr.mxu0 0.0
    %167 = vmatpush2.msra.mxu0 0.0
    %168 = vmatprep.mubr.f32.mxu0 0.0
    %169 = vmatmul.mubr.f32.gmra.mxu0 %v59
    %v170 = vpop.f32.mrf.mxu0
    %v171 = vadd.f32 %v102, %v170
    %v172 = vpop.f32.mrf.mxu0
    %173 = vmatprep.mubr.f32.mxu0 0.0
    %174 = vmatmul.mubr.f32.gmra.mxu0 %v60
    %v175 = vpop.f32.mrf.mxu0
    %v176 = vadd.f32 %v102, %v175
    %v177 = vpop.f32.mrf.mxu0
    %178 = vmatprep.mubr.f32.mxu0 0.0
    %179 = vmatmul.mubr.f32.gmra.mxu0 %v61
    %v180 = vpop.f32.mrf.mxu0
    %v181 = vadd.f32 %v102, %v180
    %v182 = vpop.f32.mrf.mxu0
    %183 = vmatprep.mubr.f32.mxu0 0.0
    %184 = vmatmul.mubr.f32.gmra.mxu0 %v62
    %v185 = vpop.f32.mrf.mxu0
    %v186 = vadd.f32 %v102, %v185
    %v187 = vpop.f32.mrf.mxu0
    %188 = vmatprep.mubr.f32.mxu0 0.0
    %189 = vmatmul.mubr.f32.gmra.mxu0 %v63
    %v190 = vpop.f32.mrf.mxu0
    %v191 = vadd.f32 %v102, %v190
    %v192 = vpop.f32.mrf.mxu0
    %193 = vmatprep.mubr.f32.mxu0 0.0
    %194 = vmatmul.mubr.f32.gmra.mxu0 %v64
    %v195 = vpop.f32.mrf.mxu0
    %v196 = vadd.f32 %v102, %v195
    %v197 = vpop.f32.mrf.mxu0
    %198 = vdwg.mxu0
    %199 = vmatprep.subr.mxu0 0.0
    %200 = vmatpush1.msra.mxu0 %v96
    %201 = vmatprep.subr.mxu0 0.0
    %202 = vmatpush1.msra.mxu0 %v95
    %203 = vmatprep.subr.mxu0 0.0
    %204 = vmatpush1.msra.mxu0 %v94
    %205 = vmatprep.subr.mxu0 0.0
    %206 = vmatpush1.msra.mxu0 %v93
    %207 = vmatprep.subr.mxu0 0.0
    %208 = vmatpush1.msra.mxu0 %v92
    %209 = vmatprep.subr.mxu0 0.0
    %210 = vmatpush1.msra.mxu0 %v91
    %211 = vmatprep.subr.mxu0 0.0
    %212 = vmatpush1.msra.mxu0 %v90
    %213 = vmatprep.subr.mxu0 0.0
    %214 = vmatpush1.msra.mxu0 %v89
    %215 = vmatprep.subr.mxu0 0.0
    %216 = vmatpush1.msra.mxu0 %v88
    %217 = vmatprep.subr.mxu0 0.0
    %218 = vmatpush1.msra.mxu0 %v87
    %219 = vmatprep.subr.mxu0 0.0
    %220 = vmatpush1.msra.mxu0 %v86
    %221 = vmatprep.subr.mxu0 0.0
    %222 = vmatpush1.msra.mxu0 %v85
    %223 = vmatprep.subr.mxu0 0.0
    %224 = vmatpush1.msra.mxu0 %v84
    %225 = vmatprep.subr.mxu0 0.0
    %226 = vmatpush1.msra.mxu0 %v83
    %227 = vmatprep.subr.mxu0 0.0
    %228 = vmatpush1.msra.mxu0 %v82
    %229 = vmatprep.subr.mxu0 0.0
    %230 = vmatpush1.msra.mxu0 %v81
    %231 = vmatprep.subr.mxu0 0.0
    %232 = vmatpush2.msra.mxu0 0.0
    %233 = vmatprep.subr.mxu0 0.0
    %234 = vmatpush2.msra.mxu0 0.0
    %235 = vmatprep.subr.mxu0 0.0
    %236 = vmatpush2.msra.mxu0 0.0
    %237 = vmatprep.subr.mxu0 0.0
    %238 = vmatpush2.msra.mxu0 0.0
    %239 = vmatprep.subr.mxu0 0.0
    %240 = vmatpush2.msra.mxu0 0.0
    %241 = vmatprep.subr.mxu0 0.0
    %242 = vmatpush2.msra.mxu0 0.0
    %243 = vmatprep.subr.mxu0 0.0
    %244 = vmatpush2.msra.mxu0 0.0
    %245 = vmatprep.subr.mxu0 0.0
    %246 = vmatpush2.msra.mxu0 0.0
    %247 = vmatprep.subr.mxu0 0.0
    %248 = vmatpush2.msra.mxu0 0.0
    %249 = vmatprep.subr.mxu0 0.0
    %250 = vmatpush2.msra.mxu0 0.0
    %251 = vmatprep.subr.mxu0 0.0
    %252 = vmatpush2.msra.mxu0 0.0
    %253 = vmatprep.subr.mxu0 0.0
    %254 = vmatpush2.msra.mxu0 0.0
    %255 = vmatprep.subr.mxu0 0.0
    %256 = vmatpush2.msra.mxu0 0.0
    %257 = vmatprep.subr.mxu0 0.0
    %258 = vmatpush2.msra.mxu0 0.0
    %259 = vmatprep.subr.mxu0 0.0
    %260 = vmatpush2.msra.mxu0 0.0
    %261 = vmatprep.subr.mxu0 0.0
    %262 = vmatpush2.msra.mxu0 0.0
    %263 = vmatprep.mubr.f32.mxu0 0.0
    %264 = vmatmul.mubr.f32.gmra.mxu0 0.0
    %v265 = vpop.f32.mrf.mxu0
    %v266 = vadd.f32 0.0, %v265
    %v267 = vpop.f32.mrf.mxu0
    %268 = vdwg.mxu0
    %v269 = vadd.f32 %v171, %v266
    %v270 = vtanh.pop %v269
    %271 = vmatprep.subr.mxu0 0.0
    %272 = vmatpush1.msra.mxu0 %v96
    %273 = vmatprep.subr.mxu0 0.0
    %274 = vmatpush1.msra.mxu0 %v95
    %275 = vmatprep.subr.mxu0 0.0
    %276 = vmatpush1.msra.mxu0 %v94
    %277 = vmatprep.subr.mxu0 0.0
    %278 = vmatpush1.msra.mxu0 %v93
    %279 = vmatprep.subr.mxu0 0.0
    %280 = vmatpush1.msra.mxu0 %v92
    %281 = vmatprep.subr.mxu0 0.0
    %282 = vmatpush1.msra.mxu0 %v91
    %283 = vmatprep.subr.mxu0 0.0
    %284 = vmatpush1.msra.mxu0 %v90
    %285 = vmatprep.subr.mxu0 0.0
    %286 = vmatpush1.msra.mxu0 %v89
    %287 = vmatprep.subr.mxu0 0.0
    %288 = vmatpush1.msra.mxu0 %v88
    %289 = vmatprep.subr.mxu0 0.0
    %290 = vmatpush1.msra.mxu0 %v87
    %291 = vmatprep.subr.mxu0 0.0
    %292 = vmatpush1.msra.mxu0 %v86
    %293 = vmatprep.subr.mxu0 0.0
    %294 = vmatpush1.msra.mxu0 %v85
    %295 = vmatprep.subr.mxu0 0.0
    %296 = vmatpush1.msra.mxu0 %v84
    %297 = vmatprep.subr.mxu0 0.0
    %298 = vmatpush1.msra.mxu0 %v83
    %299 = vmatprep.subr.mxu0 0.0
    %300 = vmatpush1.msra.mxu0 %v82
    %301 = vmatprep.subr.mxu0 0.0
    %302 = vmatpush1.msra.mxu0 %v81
    %303 = vmatprep.subr.mxu0 0.0
    %304 = vmatpush2.msra.mxu0 0.0
    %305 = vmatprep.subr.mxu0 0.0
    %306 = vmatpush2.msra.mxu0 0.0
    %307 = vmatprep.subr.mxu0 0.0
    %308 = vmatpush2.msra.mxu0 0.0
    %309 = vmatprep.subr.mxu0 0.0
    %310 = vmatpush2.msra.mxu0 0.0
    %311 = vmatprep.subr.mxu0 0.0
    %312 = vmatpush2.msra.mxu0 0.0
    %313 = vmatprep.subr.mxu0 0.0
    %314 = vmatpush2.msra.mxu0 0.0
    %315 = vmatprep.subr.mxu0 0.0
    %316 = vmatpush2.msra.mxu0 0.0
    %317 = vmatprep.subr.mxu0 0.0
    %318 = vmatpush2.msra.mxu0 0.0
    %319 = vmatprep.subr.mxu0 0.0
    %320 = vmatpush2.msra.mxu0 0.0
    %321 = vmatprep.subr.mxu0 0.0
    %322 = vmatpush2.msra.mxu0 0.0
    %323 = vmatprep.subr.mxu0 0.0
    %324 = vmatpush2.msra.mxu0 0.0
    %325 = vmatprep.subr.mxu0 0.0
    %326 = vmatpush2.msra.mxu0 0.0
    %327 = vmatprep.subr.mxu0 0.0
    %328 = vmatpush2.msra.mxu0 0.0
    %329 = vmatprep.subr.mxu0 0.0
    %330 = vmatpush2.msra.mxu0 0.0
    %331 = vmatprep.subr.mxu0 0.0
    %332 = vmatpush2.msra.mxu0 0.0
    %333 = vmatprep.subr.mxu0 0.0
    %334 = vmatpush2.msra.mxu0 0.0
    %335 = vmatprep.mubr.f32.mxu0 0.0
    %336 = vmatmul.mubr.f32.gmra.mxu0 %v270
    %v337 = vpop.f32.mrf.mxu0
    %v338 = vadd.f32 0.0, %v337
    %v339 = vpop.f32.mrf.mxu0
    %340 = vdwg.mxu0
    %v341 = vadd.f32 %v176, %v338
    %v342 = vtanh.pop %v341
    %343 = vmatprep.subr.mxu0 0.0
    %344 = vmatpush1.msra.mxu0 %v96
    %345 = vmatprep.subr.mxu0 0.0
    %346 = vmatpush1.msra.mxu0 %v95
    %347 = vmatprep.subr.mxu0 0.0
    %348 = vmatpush1.msra.mxu0 %v94
    %349 = vmatprep.subr.mxu0 0.0
    %350 = vmatpush1.msra.mxu0 %v93
    %351 = vmatprep.subr.mxu0 0.0
    %352 = vmatpush1.msra.mxu0 %v92
    %353 = vmatprep.subr.mxu0 0.0
    %354 = vmatpush1.msra.mxu0 %v91
    %355 = vmatprep.subr.mxu0 0.0
    %356 = vmatpush1.msra.mxu0 %v90
    %357 = vmatprep.subr.mxu0 0.0
    %358 = vmatpush1.msra.mxu0 %v89
    %359 = vmatprep.subr.mxu0 0.0
    %360 = vmatpush1.msra.mxu0 %v88
    %361 = vmatprep.subr.mxu0 0.0
    %362 = vmatpush1.msra.mxu0 %v87
    %363 = vmatprep.subr.mxu0 0.0
    %364 = vmatpush1.msra.mxu0 %v86
    %365 = vmatprep.subr.mxu0 0.0
    %366 = vmatpush1.msra.mxu0 %v85
    %367 = vmatprep.subr.mxu0 0.0
    %368 = vmatpush1.msra.mxu0 %v84
    %369 = vmatprep.subr.mxu0 0.0
    %370 = vmatpush1.msra.mxu0 %v83
    %371 = vmatprep.subr.mxu0 0.0
    %372 = vmatpush1.msra.mxu0 %v82
    %373 = vmatprep.subr.mxu0 0.0
    %374 = vmatpush1.msra.mxu0 %v81
    %375 = vmatprep.subr.mxu0 0.0
    %376 = vmatpush2.msra.mxu0 0.0
    %377 = vmatprep.subr.mxu0 0.0
    %378 = vmatpush2.msra.mxu0 0.0
    %379 = vmatprep.subr.mxu0 0.0
    %380 = vmatpush2.msra.mxu0 0.0
    %381 = vmatprep.subr.mxu0 0.0
    %382 = vmatpush2.msra.mxu0 0.0
    %383 = vmatprep.subr.mxu0 0.0
    %384 = vmatpush2.msra.mxu0 0.0
    %385 = vmatprep.subr.mxu0 0.0
    %386 = vmatpush2.msra.mxu0 0.0
    %387 = vmatprep.subr.mxu0 0.0
    %388 = vmatpush2.msra.mxu0 0.0
    %389 = vmatprep.subr.mxu0 0.0
    %390 = vmatpush2.msra.mxu0 0.0
    %391 = vmatprep.subr.mxu0 0.0
    %392 = vmatpush2.msra.mxu0 0.0
    %393 = vmatprep.subr.mxu0 0.0
    %394 = vmatpush2.msra.mxu0 0.0
    %395 = vmatprep.subr.mxu0 0.0
    %396 = vmatpush2.msra.mxu0 0.0
    %397 = vmatprep.subr.mxu0 0.0
    %398 = vmatpush2.msra.mxu0 0.0
    %399 = vmatprep.subr.mxu0 0.0
    %400 = vmatpush2.msra.mxu0 0.0
    %401 = vmatprep.subr.mxu0 0.0
    %402 = vmatpush2.msra.mxu0 0.0
    %403 = vmatprep.subr.mxu0 0.0
    %404 = vmatpush2.msra.mxu0 0.0
    %405 = vmatprep.subr.mxu0 0.0
    %406 = vmatpush2.msra.mxu0 0.0
    %407 = vmatprep.mubr.f32.mxu0 0.0
    %408 = vmatmul.mubr.f32.gmra.mxu0 %v342
    %v409 = vpop.f32.mrf.mxu0
    %v410 = vadd.f32 0.0, %v409
    %v411 = vpop.f32.mrf.mxu0
    %412 = vdwg.mxu0
    %v413 = vadd.f32 %v181, %v410
    %v414 = vtanh.pop %v413
    %415 = vmatprep.subr.mxu0 0.0
    %416 = vmatpush1.msra.mxu0 %v96
    %417 = vmatprep.subr.mxu0 0.0
    %418 = vmatpush1.msra.mxu0 %v95
    %419 = vmatprep.subr.mxu0 0.0
    %420 = vmatpush1.msra.mxu0 %v94
    %421 = vmatprep.subr.mxu0 0.0
    %422 = vmatpush1.msra.mxu0 %v93
    %423 = vmatprep.subr.mxu0 0.0
    %424 = vmatpush1.msra.mxu0 %v92
    %425 = vmatprep.subr.mxu0 0.0
    %426 = vmatpush1.msra.mxu0 %v91
    %427 = vmatprep.subr.mxu0 0.0
    %428 = vmatpush1.msra.mxu0 %v90
    %429 = vmatprep.subr.mxu0 0.0
    %430 = vmatpush1.msra.mxu0 %v89
    %431 = vmatprep.subr.mxu0 0.0
    %432 = vmatpush1.msra.mxu0 %v88
    %433 = vmatprep.subr.mxu0 0.0
    %434 = vmatpush1.msra.mxu0 %v87
    %435 = vmatprep.subr.mxu0 0.0
    %436 = vmatpush1.msra.mxu0 %v86
    %437 = vmatprep.subr.mxu0 0.0
    %438 = vmatpush1.msra.mxu0 %v85
    %439 = vmatprep.subr.mxu0 0.0
    %440 = vmatpush1.msra.mxu0 %v84
    %441 = vmatprep.subr.mxu0 0.0
    %442 = vmatpush1.msra.mxu0 %v83
    %443 = vmatprep.subr.mxu0 0.0
    %444 = vmatpush1.msra.mxu0 %v82
    %445 = vmatprep.subr.mxu0 0.0
    %446 = vmatpush1.msra.mxu0 %v81
    %447 = vmatprep.subr.mxu0 0.0
    %448 = vmatpush2.msra.mxu0 0.0
    %449 = vmatprep.subr.mxu0 0.0
    %450 = vmatpush2.msra.mxu0 0.0
    %451 = vmatprep.subr.mxu0 0.0
    %452 = vmatpush2.msra.mxu0 0.0
    %453 = vmatprep.subr.mxu0 0.0
    %454 = vmatpush2.msra.mxu0 0.0
    %455 = vmatprep.subr.mxu0 0.0
    %456 = vmatpush2.msra.mxu0 0.0
    %457 = vmatprep.subr.mxu0 0.0
    %458 = vmatpush2.msra.mxu0 0.0
    %459 = vmatprep.subr.mxu0 0.0
    %460 = vmatpush2.msra.mxu0 0.0
    %461 = vmatprep.subr.mxu0 0.0
    %462 = vmatpush2.msra.mxu0 0.0
    %463 = vmatprep.subr.mxu0 0.0
    %464 = vmatpush2.msra.mxu0 0.0
    %465 = vmatprep.subr.mxu0 0.0
    %466 = vmatpush2.msra.mxu0 0.0
    %467 = vmatprep.subr.mxu0 0.0
    %468 = vmatpush2.msra.mxu0 0.0
    %469 = vmatprep.subr.mxu0 0.0
    %470 = vmatpush2.msra.mxu0 0.0
    %471 = vmatprep.subr.mxu0 0.0
    %472 = vmatpush2.msra.mxu0 0.0
    %473 = vmatprep.subr.mxu0 0.0
    %474 = vmatpush2.msra.mxu0 0.0
    %475 = vmatprep.subr.mxu0 0.0
    %476 = vmatpush2.msra.mxu0 0.0
    %477 = vmatprep.subr.mxu0 0.0
    %478 = vmatpush2.msra.mxu0 0.0
    %479 = vmatprep.mubr.f32.mxu0 0.0
    %480 = vmatmul.mubr.f32.gmra.mxu0 %v414
    %v481 = vpop.f32.mrf.mxu0
    %v482 = vadd.f32 0.0, %v481
    %v483 = vpop.f32.mrf.mxu0
    %484 = vdwg.mxu0
    %v485 = vadd.f32 %v186, %v482
    %v486 = vtanh.pop %v485
    %487 = vmatprep.subr.mxu0 0.0
    %488 = vmatpush1.msra.mxu0 %v96
    %489 = vmatprep.subr.mxu0 0.0
    %490 = vmatpush1.msra.mxu0 %v95
    %491 = vmatprep.subr.mxu0 0.0
    %492 = vmatpush1.msra.mxu0 %v94
    %493 = vmatprep.subr.mxu0 0.0
    %494 = vmatpush1.msra.mxu0 %v93
    %495 = vmatprep.subr.mxu0 0.0
    %496 = vmatpush1.msra.mxu0 %v92
    %497 = vmatprep.subr.mxu0 0.0
    %498 = vmatpush1.msra.mxu0 %v91
    %499 = vmatprep.subr.mxu0 0.0
    %500 = vmatpush1.msra.mxu0 %v90
    %501 = vmatprep.subr.mxu0 0.0
    %502 = vmatpush1.msra.mxu0 %v89
    %503 = vmatprep.subr.mxu0 0.0
    %504 = vmatpush1.msra.mxu0 %v88
    %505 = vmatprep.subr.mxu0 0.0
    %506 = vmatpush1.msra.mxu0 %v87
    %507 = vmatprep.subr.mxu0 0.0
    %508 = vmatpush1.msra.mxu0 %v86
    %509 = vmatprep.subr.mxu0 0.0
    %510 = vmatpush1.msra.mxu0 %v85
    %511 = vmatprep.subr.mxu0 0.0
    %512 = vmatpush1.msra.mxu0 %v84
    %513 = vmatprep.subr.mxu0 0.0
    %514 = vmatpush1.msra.mxu0 %v83
    %515 = vmatprep.subr.mxu0 0.0
    %516 = vmatpush1.msra.mxu0 %v82
    %517 = vmatprep.subr.mxu0 0.0
    %518 = vmatpush1.msra.mxu0 %v81
    %519 = vmatprep.subr.mxu0 0.0
    %520 = vmatpush2.msra.mxu0 0.0
    %521 = vmatprep.subr.mxu0 0.0
    %522 = vmatpush2.msra.mxu0 0.0
    %523 = vmatprep.subr.mxu0 0.0
    %524 = vmatpush2.msra.mxu0 0.0
    %525 = vmatprep.subr.mxu0 0.0
    %526 = vmatpush2.msra.mxu0 0.0
    %527 = vmatprep.subr.mxu0 0.0
    %528 = vmatpush2.msra.mxu0 0.0
    %529 = vmatprep.subr.mxu0 0.0
    %530 = vmatpush2.msra.mxu0 0.0
    %531 = vmatprep.subr.mxu0 0.0
    %532 = vmatpush2.msra.mxu0 0.0
    %533 = vmatprep.subr.mxu0 0.0
    %534 = vmatpush2.msra.mxu0 0.0
    %535 = vmatprep.subr.mxu0 0.0
    %536 = vmatpush2.msra.mxu0 0.0
    %537 = vmatprep.subr.mxu0 0.0
    %538 = vmatpush2.msra.mxu0 0.0
    %539 = vmatprep.subr.mxu0 0.0
    %540 = vmatpush2.msra.mxu0 0.0
    %541 = vmatprep.subr.mxu0 0.0
    %542 = vmatpush2.msra.mxu0 0.0
    %543 = vmatprep.subr.mxu0 0.0
    %544 = vmatpush2.msra.mxu0 0.0
    %545 = vmatprep.subr.mxu0 0.0
    %546 = vmatpush2.msra.mxu0 0.0
    %547 = vmatprep.subr.mxu0 0.0
    %548 = vmatpush2.msra.mxu0 0.0
    %549 = vmatprep.subr.mxu0 0.0
    %550 = vmatpush2.msra.mxu0 0.0
    %551 = vmatprep.mubr.f32.mxu0 0.0
    %552 = vmatmul.mubr.f32.gmra.mxu0 %v486
    %v553 = vpop.f32.mrf.mxu0
    %v554 = vadd.f32 0.0, %v553
    %v555 = vpop.f32.mrf.mxu0
    %556 = vdwg.mxu0
    %v557 = vadd.f32 %v191, %v554
    %v558 = vtanh.pop %v557
    %559 = vmatprep.subr.mxu0 0.0
    %560 = vmatpush1.msra.mxu0 %v96
    %561 = vmatprep.subr.mxu0 0.0
    %562 = vmatpush1.msra.mxu0 %v95
    %563 = vmatprep.subr.mxu0 0.0
    %564 = vmatpush1.msra.mxu0 %v94
    %565 = vmatprep.subr.mxu0 0.0
    %566 = vmatpush1.msra.mxu0 %v93
    %567 = vmatprep.subr.mxu0 0.0
    %568 = vmatpush1.msra.mxu0 %v92
    %569 = vmatprep.subr.mxu0 0.0
    %570 = vmatpush1.msra.mxu0 %v91
    %571 = vmatprep.subr.mxu0 0.0
    %572 = vmatpush1.msra.mxu0 %v90
    %573 = vmatprep.subr.mxu0 0.0
    %574 = vmatpush1.msra.mxu0 %v89
    %575 = vmatprep.subr.mxu0 0.0
    %576 = vmatpush1.msra.mxu0 %v88
    %577 = vmatprep.subr.mxu0 0.0
    %578 = vmatpush1.msra.mxu0 %v87
    %579 = vmatprep.subr.mxu0 0.0
    %580 = vmatpush1.msra.mxu0 %v86
    %581 = vmatprep.subr.mxu0 0.0
    %582 = vmatpush1.msra.mxu0 %v85
    %583 = vmatprep.subr.mxu0 0.0
    %584 = vmatpush1.msra.mxu0 %v84
    %585 = vmatprep.subr.mxu0 0.0
    %586 = vmatpush1.msra.mxu0 %v83
    %587 = vmatprep.subr.mxu0 0.0
    %588 = vmatpush1.msra.mxu0 %v82
    %589 = vmatprep.subr.mxu0 0.0
    %590 = vmatpush1.msra.mxu0 %v81
    %591 = vmatprep.subr.mxu0 0.0
    %592 = vmatpush2.msra.mxu0 0.0
    %593 = vmatprep.subr.mxu0 0.0
    %594 = vmatpush2.msra.mxu0 0.0
    %595 = vmatprep.subr.mxu0 0.0
    %596 = vmatpush2.msra.mxu0 0.0
    %597 = vmatprep.subr.mxu0 0.0
    %598 = vmatpush2.msra.mxu0 0.0
    %599 = vmatprep.subr.mxu0 0.0
    %600 = vmatpush2.msra.mxu0 0.0
    %601 = vmatprep.subr.mxu0 0.0
    %602 = vmatpush2.msra.mxu0 0.0
    %603 = vmatprep.subr.mxu0 0.0
    %604 = vmatpush2.msra.mxu0 0.0
    %605 = vmatprep.subr.mxu0 0.0
    %606 = vmatpush2.msra.mxu0 0.0
    %607 = vmatprep.subr.mxu0 0.0
    %608 = vmatpush2.msra.mxu0 0.0
    %609 = vmatprep.subr.mxu0 0.0
    %610 = vmatpush2.msra.mxu0 0.0
    %611 = vmatprep.subr.mxu0 0.0
    %612 = vmatpush2.msra.mxu0 0.0
    %613 = vmatprep.subr.mxu0 0.0
    %614 = vmatpush2.msra.mxu0 0.0
    %615 = vmatprep.subr.mxu0 0.0
    %616 = vmatpush2.msra.mxu0 0.0
    %617 = vmatprep.subr.mxu0 0.0
    %618 = vmatpush2.msra.mxu0 0.0
    %619 = vmatprep.subr.mxu0 0.0
    %620 = vmatpush2.msra.mxu0 0.0
    %621 = vmatprep.subr.mxu0 0.0
    %622 = vmatpush2.msra.mxu0 0.0
    %623 = vmatprep.mubr.f32.mxu0 0.0
    %624 = vmatmul.mubr.f32.gmra.mxu0 %v558
    %v625 = vpop.f32.mrf.mxu0
    %v626 = vadd.f32 0.0, %v625
    %v627 = vpop.f32.mrf.mxu0
    %628 = vdwg.mxu0
    %v629 = vadd.f32 %v196, %v626
    %v630 = vtanh.pop %v629
    %631 = vst [vmem:[#allocation8] sm:$0xff] %v270
    %632 = vst [vmem:[#allocation8 + $0x8] sm:$0xff] %v342
    %633 = vst [vmem:[#allocation8 + $0x10] sm:$0xff] %v414
    %634 = vst [vmem:[#allocation8 + $0x18] sm:$0xff] %v486
    %635 = vst [vmem:[#allocation8 + $0x20] sm:$0xff] %v558
    %636 = vst [vmem:[#allocation8 + $0x28] sm:$0xff] %v630
    // Predicated region
    $region30: #{tpu_custom_call.1} parent=1 // pred_check
      _
    $region31: #{tpu_custom_call.1} parent=1 // pred_check_branch
      %638 = sbr.rel (0) target = $region33
    $region32: #{tpu_custom_call.1} parent=1 // pred_region
      %s640 = ssub.s32 768, 768
      %641 = vsyncadd [#allocation4], %s640
      %s642 = sshll.u32 [#allocation8], 4
      %s643 = int_to_ptr.vmem [resolvable:$true] %s642
      %648 = dma.vmem_to_hbm [thread:$0]  %s643, 768, %s4, [#allocation4], 128, 128, 8
    $region33: #{tpu_custom_call.1} parent=1 // pred_fallthru
      _
    // Predicated region
    $region34: #{tpu_custom_call.1} parent=1 // pred_check
      _
    $region35: #{tpu_custom_call.1} parent=1 // pred_check_branch
      %650 = sbr.rel (0) target = $region37
    $region36: #{tpu_custom_call.1} parent=1 // pred_region
      %651 = dma.done [#allocation4], 768
    $region37: #{tpu_custom_call.1} parent=1 // pred_fallthru
      _
    %652 = vsyncpa [#allocation3], 1
    %653 = vsyncpa [#allocation6], 1
    %654 = vsyncpa [#allocation4], 1

</llo_original>
